<compile_context>
chip_gen: v7x
topology: tpu7x:2x2x1
jax: 0.10.0
libtpu: 0.0.40
codegen_flags: <defaults>
</compile_context>

<pallas_src>
import functools

import numpy as np
import jax
import jax.numpy as jnp
from jax import lax
from jax.experimental import pallas as pl
from jax.experimental.pallas import tpu as pltpu

B_PAD = 8        # sublane-aligned batch pad (grow in multiples of 8 for bigger batches)
F_PAD = 128      # lane-aligned feature pad
H1C, H1P = 2, 4  # hidden widths of conductance_net / ploss first layers
HW = H1C + H1P   # fused hidden width (6)
DIFF_OFF = 8     # first column of the per-target temperature-difference blocks


# --------------------------------------------------------------------------- #
# Shared per-step compute (4 MXU issues, chain depth 3, bf16 operands)
# --------------------------------------------------------------------------- #
def _tnn_compute(inp, x, a_inp, a_x, w2, summ, b1, b2, ecaps):
    """dx/dt = f(inp, x).

    combo cols [0,HW)                     : fused first-layer preacts [cond|ploss]
    combo cols DIFF_OFF + i*n_conds + c   : sum_{j: adj[i,j]==c} (temps[:,j]-x[:,i])
    cp    cols [0,virt_ext)               : ploss preacts
    cp    diff-block cols                 : conductance preacts (replicated per target)
    """
    inp16 = inp.astype(jnp.bfloat16)
    x16 = x.astype(jnp.bfloat16)
    combo = (jnp.dot(inp16, a_inp, preferred_element_type=jnp.float32)
             + jnp.dot(x16, a_x, preferred_element_type=jnp.float32)
             + b1)
    h = jnp.tanh(combo)                           # only cols [0,HW) feed w2 (rest masked)
    cp = jnp.dot(h.astype(jnp.bfloat16), w2,
                 preferred_element_type=jnp.float32) + b2
    elu = jnp.where(cp > 0.0, cp, jnp.exp(jnp.minimum(cp, 0.0)) - 1.0)
    conducts = jnp.abs(elu + 1.0)                 # Biased_Elu then abs, in-place on diff cols
    prod = combo * conducts                       # meaningful only on diff cols (summ masks)
    temp_diffs = jnp.dot(prod.astype(jnp.bfloat16), summ,
                         preferred_element_type=jnp.float32)
    power_loss = jax.nn.sigmoid(cp)               # abs(sigmoid) == sigmoid
    dxdt = ecaps * (temp_diffs + power_loss)      # ecaps == exp(caps), 0 on padded cols
    return jnp.clip(dxdt, -1.0, 1.0)


# --------------------------------------------------------------------------- #
# Kernels
# --------------------------------------------------------------------------- #
def tnn_deriv_kernel(idx_ref, u_ref, x_ref, a_inp_ref, a_x_ref, w2_ref, summ_ref,
                     b1_ref, b2_ref, ecaps_ref, out_ref):
    """Single module forward: dx/dt = f(t, x).  idx_ref (SMEM scalar prefetch) is
    consumed only by u's index_map; the gathered u row arrives as u_ref."""
    del idx_ref
    out_ref[...] = _tnn_compute(
        u_ref[0], x_ref[...], a_inp_ref[...], a_x_ref[...], w2_ref[...],
        summ_ref[...], b1_ref[...], b2_ref[...], ecaps_ref[...])


def tnn_euler_kernel(u_ref, x0_ref, a_inp_ref, a_x_ref, w2_ref, summ_ref,
                     b1_ref, b2_ref, ecaps_ref, traj_ref, x_state, *, dt, t_chunk):
    """Fused, chunked explicit-Euler time loop.  One grid step integrates t_chunk
    Euler steps; the state stays in VMEM scratch, weights stay VMEM-resident."""
    @pl.when(pl.program_id(0) == 0)
    def _():
        x_state[...] = x0_ref[...]

    a_inp, a_x = a_inp_ref[...], a_x_ref[...]
    w2, summ = w2_ref[...], summ_ref[...]
    b1, b2, ecaps = b1_ref[...], b2_ref[...], ecaps_ref[...]

    def step(k, x):
        dxdt = _tnn_compute(u_ref[k], x, a_inp, a_x, w2, summ, b1, b2, ecaps)
        x_new = x + dt * dxdt
        traj_ref[k] = x_new
        return x_new

    x_state[...] = lax.fori_loop(0, t_chunk, step, x_state[...],
                                 unroll=min(4, t_chunk))


# --------------------------------------------------------------------------- #
# Parameter / constant construction (host, done ONCE)
# --------------------------------------------------------------------------- #
def build_adj_mat(n_temps, output_size):
    adj = np.zeros((n_temps, n_temps), dtype=int)
    triu = np.triu_indices(n_temps, 1)
    adj[triu] = np.arange(len(triu[0]))
    adj = adj + adj.T
    return adj[:output_size, :]


def init_params(key, n_input_feats, n_targets, n_temps, n_virtual=0):
    virt_ext = n_targets + n_virtual
    n_conds = (n_temps * (n_temps - 1)) // 2
    d_in = n_input_feats + virt_ext

    def linear(k, fan_in, fan_out):
        kw, kb = jax.random.split(k)
        bound = 1.0 / np.sqrt(fan_in)
        w = jax.random.uniform(kw, (fan_in, fan_out), jnp.float32, -bound, bound)
        b = jax.random.uniform(kb, (fan_out,), jnp.float32, -bound, bound)
        return w, b

    ks = jax.random.split(key, 5)
    w1c, b1c = linear(ks[0], d_in, H1C)
    w2c, b2c = linear(ks[1], H1C, n_conds)
    w1p, b1p = linear(ks[2], d_in, H1P)
    w2p, b2p = linear(ks[3], H1P, virt_ext)
    caps = -7.0 + 0.5 * jax.random.normal(ks[4], (virt_ext,), jnp.float32)
    return dict(w1c=w1c, b1c=b1c, w2c=w2c, b2c=b2c,
                w1p=w1p, b1p=b1p, w2p=w2p, b2p=b2p, caps=caps)


def build_constants(params, temp_idcs, adj_mat, n_input_feats, n_targets, n_temps):
    """Precompute all padded/fused constant operands ONCE (outside the ODE loop).

    Matmul constants are stored in bf16 (native MXU dtype); the 0/±1 selection
    entries and small-integer diff coefficients are exact in bf16.
    Assumes n_virtual == 0 (the torch module's broadcasting requires it)."""
    F = n_input_feats
    virt_ext = int(np.asarray(params["caps"]).shape[0])
    n_conds = (n_temps * (n_temps - 1)) // 2
    NT = n_temps
    assert virt_ext == n_targets, "n_virtual must be 0"
    assert DIFF_OFF >= HW and DIFF_OFF >= virt_ext
    assert DIFF_OFF + n_targets * n_conds <= F_PAD
    assert F <= F_PAD

    w1c = np.asarray(params["w1c"], np.float32); b1c = np.asarray(params["b1c"], np.float32)
    w2c = np.asarray(params["w2c"], np.float32); b2c = np.asarray(params["b2c"], np.float32)
    w1p = np.asarray(params["w1p"], np.float32); b1p = np.asarray(params["b1p"], np.float32)
    w2p = np.asarray(params["w2p"], np.float32); b2p = np.asarray(params["b2p"], np.float32)
    caps = np.asarray(params["caps"], np.float32)
    adj = np.asarray(adj_mat)
    tidx = np.asarray(temp_idcs)

    # --- fused first matmul: combo = inp @ a_inp + x @ a_x + b1 --------------- #
    a_inp = np.zeros((F_PAD, F_PAD), np.float32)
    a_x = np.zeros((F_PAD, F_PAD), np.float32)
    a_inp[:F, 0:H1C] = w1c[:F]
    a_inp[:F, H1C:HW] = w1p[:F]
    a_x[:virt_ext, 0:H1C] = w1c[F:]
    a_x[:virt_ext, H1C:HW] = w1p[F:]
    # Diff blocks, aggregated by conductance index (the j==i diagonal contributes
    # exactly 0 since temps[:, i] == x[:, i]):
    #   combo[:, DIFF_OFF + i*n_conds + c] = sum_{j: adj[i,j]==c} (temps[:, j] - x[:, i])
    for i in range(n_targets):
        for j in range(NT):
            col = DIFF_OFF + i * n_conds + int(adj[i, j])
            if j < n_targets:
                a_x[j, col] += 1.0                      # temps[:, j] = x[:, j]
            else:
                a_inp[tidx[j - n_targets], col] += 1.0  # temps[:, j] = inp[:, temp_idcs]
            a_x[i, col] -= 1.0                          # - x[:, i]

    # --- fused second matmul: cp = tanh(combo) @ w2 + b2 ---------------------- #
    # Conductance preactivations are REPLICATED into every target's diff block,
    # so |ELU+1| lands directly on the diff columns -> no `sel` gather matmul.
    w2 = np.zeros((F_PAD, F_PAD), np.float32)
    b2v = np.zeros((F_PAD,), np.float32)
    w2[H1C:HW, 0:virt_ext] = w2p
    b2v[0:virt_ext] = b2p
    for i in range(n_targets):
        sl = slice(DIFF_OFF + i * n_conds, DIFF_OFF + (i + 1) * n_conds)
        w2[0:H1C, sl] = w2c
        b2v[sl] = b2c

    # --- reduction matmul: temp_diffs[:, i] = sum over block-i columns -------- #
    # Rows outside the diff blocks are zero on purpose: they mask the hidden /
    # ploss / padded columns of `prod` (where conducts is garbage or exactly 1).
    summ = np.zeros((F_PAD, F_PAD), np.float32)
    for i in range(n_targets):
        for c in range(n_conds):
            summ[DIFF_OFF + i * n_conds + c, i] = 1.0

    # --- pre-broadcast bias / caps tiles (no in-kernel sublane broadcast) ----- #
    b1v = np.zeros((F_PAD,), np.float32)
    b1v[0:H1C] = b1c
    b1v[H1C:HW] = b1p
    ecaps_v = np.zeros((F_PAD,), np.float32)
    ecaps_v[0:virt_ext] = np.exp(caps)

    def tile(v):
        return jnp.asarray(np.broadcast_to(v, (B_PAD, F_PAD)).copy())

    return dict(
        a_inp=jnp.asarray(a_inp, jnp.bfloat16),
        a_x=jnp.asarray(a_x, jnp.bfloat16),
        w2=jnp.asarray(w2, jnp.bfloat16),
        summ=jnp.asarray(summ, jnp.bfloat16),
        b1=tile(b1v), b2=tile(b2v), ecaps=tile(ecaps_v))


def pad_u(u):
    """Pad the exogenous-input tensor once at init: (T, B, F) -> (T, B_PAD, F_PAD)."""
    T, B, F = u.shape
    return jnp.pad(jnp.asarray(u, jnp.float32),
                   ((0, 0), (0, B_PAD - B), (0, F_PAD - F)))


# --------------------------------------------------------------------------- #
# Wrappers
# --------------------------------------------------------------------------- #
def _const2(*_):
    return (0, 0)


def adjoint_conform_tnn_forward(t, x, u_pad, consts):
    """Single evaluation matching AdjointConformTNN.forward(t, x).

    The u time index int(t*2) is a scalar-prefetch argument consumed by u's
    index_map (truncation toward zero matches torch's int() cast for t >= 0)."""
    B, n_tgt = x.shape
    idx = (jnp.asarray(t, jnp.float32) * 2.0).astype(jnp.int32).reshape((1,))
    x_pad = jnp.pad(jnp.asarray(x, jnp.float32),
                    ((0, B_PAD - B), (0, F_PAD - n_tgt)))

    grid_spec = pltpu.PrefetchScalarGridSpec(
        num_scalar_prefetch=1,
        grid=(1,),
        in_specs=[
            pl.BlockSpec((1, B_PAD, F_PAD), lambda s, idx_ref: (idx_ref[0], 0, 0)),
            pl.BlockSpec((B_PAD, F_PAD), _const2),   # x
            pl.BlockSpec((F_PAD, F_PAD), _const2),   # a_inp
            pl.BlockSpec((F_PAD, F_PAD), _const2),   # a_x
            pl.BlockSpec((F_PAD, F_PAD), _const2),   # w2
            pl.BlockSpec((F_PAD, F_PAD), _const2),   # summ
            pl.BlockSpec((B_PAD, F_PAD), _const2),   # b1
            pl.BlockSpec((B_PAD, F_PAD), _const2),   # b2
            pl.BlockSpec((B_PAD, F_PAD), _const2),   # ecaps
        ],
        out_specs=pl.BlockSpec((B_PAD, F_PAD), _const2),
    )
    out = pl.pallas_call(
        tnn_deriv_kernel,
        out_shape=jax.ShapeDtypeStruct((B_PAD, F_PAD), jnp.float32),
        grid_spec=grid_spec,
    )(idx, u_pad, x_pad, consts["a_inp"], consts["a_x"], consts["w2"],
      consts["summ"], consts["b1"], consts["b2"], consts["ecaps"])
    return out[:B, :n_tgt]


def adjoint_conform_tnn_euler(x0, u_pad, consts, n_steps, dt=0.5, t_chunk=8):
    """Fused, chunked ODE time loop (explicit Euler).

    dt must be 0.5 so that the u time index int(t*2) equals the Euler step.
    `t_chunk` Euler steps run per grid iteration (inner fori_loop) to amortize
    per-grid-step overhead; weights are DMA'd once and stay VMEM-resident."""
    assert float(dt) == 0.5, "fused Euler kernel couples the u index to dt == 0.5"
    B, n_tgt = x0.shape
    assert u_pad.shape[0] >= n_steps

    t_chunk = max(1, min(int(t_chunk), n_steps))
    while n_steps % t_chunk:                 # largest divisor of n_steps <= request
        t_chunk -= 1
    n_chunks = n_steps // t_chunk

    x0_pad = jnp.pad(jnp.asarray(x0, jnp.float32),
                     ((0, B_PAD - B), (0, F_PAD - n_tgt)))

    # TODO(synk): on v7x, add a leading "parallel" grid axis over independent
    # trajectories / batch groups so the second TensorCore is used as well.
    traj = pl.pallas_call(
        functools.partial(tnn_euler_kernel, dt=float(dt), t_chunk=t_chunk),
        out_shape=jax.ShapeDtypeStruct((n_steps, B_PAD, F_PAD), jnp.float32),
        grid=(n_chunks,),
        in_specs=[
            pl.BlockSpec((t_chunk, B_PAD, F_PAD), lambda s: (s, 0, 0)),  # u chunk
            pl.BlockSpec((B_PAD, F_PAD), lambda s: (0, 0)),              # x0
            pl.BlockSpec((F_PAD, F_PAD), lambda s: (0, 0)),              # a_inp
            pl.BlockSpec((F_PAD, F_PAD), lambda s: (0, 0)),              # a_x
            pl.BlockSpec((F_PAD, F_PAD), lambda s: (0, 0)),              # w2
            pl.BlockSpec((F_PAD, F_PAD), lambda s: (0, 0)),              # summ
            pl.BlockSpec((B_PAD, F_PAD), lambda s: (0, 0)),              # b1
            pl.BlockSpec((B_PAD, F_PAD), lambda s: (0, 0)),              # b2
            pl.BlockSpec((B_PAD, F_PAD), lambda s: (0, 0)),              # ecaps
        ],
        out_specs=pl.BlockSpec((t_chunk, B_PAD, F_PAD), lambda s: (s, 0, 0)),
        scratch_shapes=[pltpu.VMEM((B_PAD, F_PAD), jnp.float32)],        # ODE state
        compiler_params=pltpu.CompilerParams(dimension_semantics=("arbitrary",)),
    )(u_pad[:n_steps], x0_pad, consts["a_inp"], consts["a_x"], consts["w2"],
      consts["summ"], consts["b1"], consts["b2"], consts["ecaps"])
    return traj[:, :B, :n_tgt]


# --------------------------------------------------------------------------- #
# Pure numpy references (f32; kernel uses bf16 matmuls -> looser tolerances)
# --------------------------------------------------------------------------- #
def reference_deriv(inp, xn, p, temp_idcs, adj_mat):
    all_input = np.concatenate([inp, xn], axis=1)
    h = np.tanh(all_input @ p["w1c"] + p["b1c"])
    c = h @ p["w2c"] + p["b2c"]
    elu = np.where(c > 0, c, np.exp(np.minimum(c, 0.0)) - 1.0)
    conducts = np.abs(elu + 1.0)
    hp = np.tanh(all_input @ p["w1p"] + p["b1p"])
    power_loss = np.abs(1.0 / (1.0 + np.exp(-(hp @ p["w2p"] + p["b2p"]))))
    temps = np.concatenate([xn, inp[:, temp_idcs]], axis=1)
    gathered = conducts[:, adj_mat]                                   # (B, n_targets, n_temps)
    temp_diffs = np.sum((temps[:, None, :] - xn[:, :, None]) * gathered, axis=-1)
    out = np.exp(p["caps"]) * (temp_diffs + power_loss)
    return np.clip(out, -1.0, 1.0)


def reference_forward(t, x, u, params, temp_idcs, adj_mat):
    p = {k: np.asarray(v, np.float32) for k, v in params.items()}
    idx = int(float(t) * 2)
    return reference_deriv(np.asarray(u, np.float32)[idx],
                           np.asarray(x, np.float32), p, temp_idcs, adj_mat)


def reference_euler(u, x0, params, temp_idcs, adj_mat, n_steps, dt):
    p = {k: np.asarray(v, np.float32) for k, v in params.items()}
    un = np.asarray(u, np.float32)
    x = np.asarray(x0, np.float32)
    traj = []
    for k in range(n_steps):
        dx = reference_deriv(un[k], x, p, temp_idcs, adj_mat)
        x = (x + dt * dx).astype(np.float32)
        traj.append(x)
    return np.stack(traj)


# --------------------------------------------------------------------------- #
if __name__ == "__main__":
    # 2 target temperatures, 4 input features of which the first 2 are measured
    # temperatures, no virtual temperatures.
    n_targets = 2
    n_input_feats = 4
    temp_idcs = [0, 1]
    n_virtual = 0
    n_temps = n_targets + len(temp_idcs) + n_virtual     # 4
    batch = 2
    n_time = 8

    key = jax.random.PRNGKey(0)
    k_u, k_x, k_p = jax.random.split(key, 3)

    u = jax.random.normal(k_u, (n_time, batch, n_input_feats), jnp.float32)
    x = 0.5 * jax.random.normal(k_x, (batch, n_targets), jnp.float32)
    t = jnp.float32(1.5)                                  # -> index 3 into u

    params = init_params(k_p, n_input_feats, n_targets, n_temps, n_virtual)
    adj_mat = build_adj_mat(n_temps, n_targets)

    # One-time host work: fused/padded bf16 constants + padded u.
    consts = build_constants(params, temp_idcs, adj_mat,
                             n_input_feats, n_targets, n_temps)
    u_pad = pad_u(u)

    # 1) single forward == AdjointConformTNN.forward(t, x)  (u row via scalar prefetch)
    out = jax.block_until_ready(adjoint_conform_tnn_forward(t, x, u_pad, consts))
    ref = reference_forward(t, x, u, params, temp_idcs, adj_mat)
    np.testing.assert_allclose(np.asarray(out), ref, rtol=2e-2, atol=2e-4)

    # 2) fused + chunked ODE time loop (explicit Euler, dt = 0.5): one pallas_call
    #    for the whole trajectory, weights resident in VMEM, t_chunk steps / grid step.
    traj = jax.block_until_ready(
        adjoint_conform_tnn_euler(x, u_pad, consts, n_steps=n_time, dt=0.5, t_chunk=8))
    ref_traj = reference_euler(u, x, params, temp_idcs, adj_mat, n_time, 0.5)
    np.testing.assert_allclose(np.asarray(traj), ref_traj, rtol=2e-2, atol=3e-4)

    print("KERNEL_OK")
</pallas_src>

<mosaic_0001>
module attributes {stable_mosaic.version = 11 : i64} {
  func.func @tnn_deriv_kernel(%arg0: i32, %arg1: memref<1xi32, #tpu.memory_space<smem>>, %arg2: memref<1x8x128xf32, #tpu.memory_space<vmem>>, %arg3: memref<8x128xf32, #tpu.memory_space<vmem>>, %arg4: memref<128x128xbf16, #tpu.memory_space<vmem>>, %arg5: memref<128x128xbf16, #tpu.memory_space<vmem>>, %arg6: memref<128x128xbf16, #tpu.memory_space<vmem>>, %arg7: memref<128x128xbf16, #tpu.memory_space<vmem>>, %arg8: memref<8x128xf32, #tpu.memory_space<vmem>>, %arg9: memref<8x128xf32, #tpu.memory_space<vmem>>, %arg10: memref<8x128xf32, #tpu.memory_space<vmem>>, %arg11: memref<8x128xf32, #tpu.memory_space<vmem>>) attributes {dimension_semantics = [#tpu.dimension_semantics<arbitrary>], iteration_bounds = array<i64: 1>, scalar_prefetch = 1 : i64, scratch_operands = 0 : i64, tpu.core_type = #tpu.core_type<tc>, window_params = [{transform_indices = @transform_0, window_bounds = array<i64: 1, 8, 128>}, {pipeline_mode = #tpu.pipeline_mode<synchronous>, transform_indices = @transform_1, window_bounds = array<i64: 8, 128>}, {pipeline_mode = #tpu.pipeline_mode<synchronous>, transform_indices = @transform_2, window_bounds = array<i64: 128, 128>}, {pipeline_mode = #tpu.pipeline_mode<synchronous>, transform_indices = @transform_3, window_bounds = array<i64: 128, 128>}, {pipeline_mode = #tpu.pipeline_mode<synchronous>, transform_indices = @transform_4, window_bounds = array<i64: 128, 128>}, {pipeline_mode = #tpu.pipeline_mode<synchronous>, transform_indices = @transform_5, window_bounds = array<i64: 128, 128>}, {pipeline_mode = #tpu.pipeline_mode<synchronous>, transform_indices = @transform_6, window_bounds = array<i64: 8, 128>}, {pipeline_mode = #tpu.pipeline_mode<synchronous>, transform_indices = @transform_7, window_bounds = array<i64: 8, 128>}, {pipeline_mode = #tpu.pipeline_mode<synchronous>, transform_indices = @transform_8, window_bounds = array<i64: 8, 128>}, {pipeline_mode = #tpu.pipeline_mode<synchronous>, transform_indices = @transform_9, window_bounds = array<i64: 8, 128>}]} {
    %c0 = arith.constant 0 : index
    %c0_0 = arith.constant 0 : index
    %c0_1 = arith.constant 0 : index
    %0 = vector.load %arg2[%c0, %c0_0, %c0_1] : memref<1x8x128xf32, #tpu.memory_space<vmem>>, vector<1x8x128xf32>
    %1 = vector.shape_cast %0 : vector<1x8x128xf32> to vector<8x128xf32>
    %c0_2 = arith.constant 0 : index
    %c0_3 = arith.constant 0 : index
    %2 = vector.load %arg3[%c0_2, %c0_3] : memref<8x128xf32, #tpu.memory_space<vmem>>, vector<8x128xf32>
    %c0_4 = arith.constant 0 : index
    %c0_5 = arith.constant 0 : index
    %3 = vector.load %arg4[%c0_4, %c0_5] : memref<128x128xbf16, #tpu.memory_space<vmem>>, vector<128x128xbf16>
    %c0_6 = arith.constant 0 : index
    %c0_7 = arith.constant 0 : index
    %4 = vector.load %arg5[%c0_6, %c0_7] : memref<128x128xbf16, #tpu.memory_space<vmem>>, vector<128x128xbf16>
    %c0_8 = arith.constant 0 : index
    %c0_9 = arith.constant 0 : index
    %5 = vector.load %arg6[%c0_8, %c0_9] : memref<128x128xbf16, #tpu.memory_space<vmem>>, vector<128x128xbf16>
    %c0_10 = arith.constant 0 : index
    %c0_11 = arith.constant 0 : index
    %6 = vector.load %arg7[%c0_10, %c0_11] : memref<128x128xbf16, #tpu.memory_space<vmem>>, vector<128x128xbf16>
    %c0_12 = arith.constant 0 : index
    %c0_13 = arith.constant 0 : index
    %7 = vector.load %arg8[%c0_12, %c0_13] : memref<8x128xf32, #tpu.memory_space<vmem>>, vector<8x128xf32>
    %c0_14 = arith.constant 0 : index
    %c0_15 = arith.constant 0 : index
    %8 = vector.load %arg9[%c0_14, %c0_15] : memref<8x128xf32, #tpu.memory_space<vmem>>, vector<8x128xf32>
    %c0_16 = arith.constant 0 : index
    %c0_17 = arith.constant 0 : index
    %9 = vector.load %arg10[%c0_16, %c0_17] : memref<8x128xf32, #tpu.memory_space<vmem>>, vector<8x128xf32>
    %10 = arith.truncf %1 : vector<8x128xf32> to vector<8x128xbf16>
    %11 = arith.truncf %2 : vector<8x128xf32> to vector<8x128xbf16>
    %cst = arith.constant dense<0.000000e+00> : vector<8x128xf32>
    %12 = tpu.matmul %10, %3, %cst {dimension_numbers = #tpu.dot_dimension_numbers<[1], [0], [0], [1], [0, 0, 1, 1], [], []>} : vector<8x128xbf16>, vector<128x128xbf16>, vector<8x128xf32> -> vector<8x128xf32>
    %cst_18 = arith.constant dense<0.000000e+00> : vector<8x128xf32>
    %13 = tpu.matmul %11, %4, %cst_18 {dimension_numbers = #tpu.dot_dimension_numbers<[1], [0], [0], [1], [0, 0, 1, 1], [], []>} : vector<8x128xbf16>, vector<128x128xbf16>, vector<8x128xf32> -> vector<8x128xf32>
    %14 = arith.addf %12, %13 : vector<8x128xf32>
    %15 = arith.addf %14, %7 : vector<8x128xf32>
    %16 = math.tanh %15 : vector<8x128xf32>
    %17 = arith.truncf %16 : vector<8x128xf32> to vector<8x128xbf16>
    %cst_19 = arith.constant dense<0.000000e+00> : vector<8x128xf32>
    %18 = tpu.matmul %17, %5, %cst_19 {dimension_numbers = #tpu.dot_dimension_numbers<[1], [0], [0], [1], [0, 0, 1, 1], [], []>} : vector<8x128xbf16>, vector<128x128xbf16>, vector<8x128xf32> -> vector<8x128xf32>
    %19 = arith.addf %18, %8 : vector<8x128xf32>
    %cst_20 = arith.constant 0.000000e+00 : f32
    %20 = vector.broadcast %cst_20 : f32 to vector<8x128xf32>
    %21 = arith.cmpf ogt, %19, %20 : vector<8x128xf32>
    %cst_21 = arith.constant 0.000000e+00 : f32
    %22 = vector.broadcast %cst_21 : f32 to vector<8x128xf32>
    %23 = arith.minimumf %19, %22 : vector<8x128xf32>
    %24 = math.exp %23 : vector<8x128xf32>
    %cst_22 = arith.constant 1.000000e+00 : f32
    %25 = vector.broadcast %cst_22 : f32 to vector<8x128xf32>
    %26 = arith.subf %24, %25 : vector<8x128xf32>
    %27 = arith.select %21, %19, %26 : vector<8x128xi1>, vector<8x128xf32>
    %cst_23 = arith.constant 1.000000e+00 : f32
    %28 = vector.broadcast %cst_23 : f32 to vector<8x128xf32>
    %29 = arith.addf %27, %28 : vector<8x128xf32>
    %30 = math.absf %29 : vector<8x128xf32>
    %31 = arith.mulf %15, %30 : vector<8x128xf32>
    %32 = arith.truncf %31 : vector<8x128xf32> to vector<8x128xbf16>
    %cst_24 = arith.constant dense<0.000000e+00> : vector<8x128xf32>
    %33 = tpu.matmul %32, %6, %cst_24 {dimension_numbers = #tpu.dot_dimension_numbers<[1], [0], [0], [1], [0, 0, 1, 1], [], []>} : vector<8x128xbf16>, vector<128x128xbf16>, vector<8x128xf32> -> vector<8x128xf32>
    %34 = arith.negf %19 : vector<8x128xf32>
    %35 = math.exp %34 : vector<8x128xf32>
    %cst_25 = arith.constant 1.000000e+00 : f32
    %36 = vector.broadcast %cst_25 : f32 to vector<8x128xf32>
    %37 = arith.addf %36, %35 : vector<8x128xf32>
    %38 = arith.divf %36, %37 : vector<8x128xf32>
    %39 = arith.addf %33, %38 : vector<8x128xf32>
    %40 = arith.mulf %9, %39 : vector<8x128xf32>
    %cst_26 = arith.constant -1.000000e+00 : f32
    %cst_27 = arith.constant 1.000000e+00 : f32
    %41 = vector.broadcast %cst_26 : f32 to vector<8x128xf32>
    %42 = arith.maximumf %41, %40 : vector<8x128xf32>
    %43 = vector.broadcast %cst_27 : f32 to vector<8x128xf32>
    %44 = arith.minimumf %43, %42 : vector<8x128xf32>
    %c0_28 = arith.constant 0 : index
    %c0_29 = arith.constant 0 : index
    %45 = vector.load %arg11[%c0_28, %c0_29] : memref<8x128xf32, #tpu.memory_space<vmem>>, vector<8x128xf32>
    tpu.vector_store %arg11[%c0_28, %c0_29], %44 {strides = array<i32>} : memref<8x128xf32, #tpu.memory_space<vmem>>, vector<8x128xf32>,
    return
  }
  func.func @transform_0(%arg0: i32, %arg1: memref<1xi32, #tpu.memory_space<smem>>) -> (i32, i32, i32) {
    %c0 = arith.constant 0 : index
    %0 = memref.load %arg1[%c0] : memref<1xi32, #tpu.memory_space<smem>>
    %c0_i32 = arith.constant 0 : i32
    %c0_i32_0 = arith.constant 0 : i32
    %c0_i32_1 = arith.constant 0 : i32
    return %0, %c0_i32, %c0_i32_0 : i32, i32, i32
  }
  func.func @transform_1(%arg0: i32, %arg1: memref<1xi32, #tpu.memory_space<smem>>) -> (i32, i32) {
    %c0_i32 = arith.constant 0 : i32
    %c0_i32_0 = arith.constant 0 : i32
    %c0_i32_1 = arith.constant 0 : i32
    return %c0_i32, %c0_i32_0 : i32, i32
  }
  func.func @transform_2(%arg0: i32, %arg1: memref<1xi32, #tpu.memory_space<smem>>) -> (i32, i32) {
    %c0_i32 = arith.constant 0 : i32
    %c0_i32_0 = arith.constant 0 : i32
    %c0_i32_1 = arith.constant 0 : i32
    return %c0_i32, %c0_i32_0 : i32, i32
  }
  func.func @transform_3(%arg0: i32, %arg1: memref<1xi32, #tpu.memory_space<smem>>) -> (i32, i32) {
    %c0_i32 = arith.constant 0 : i32
    %c0_i32_0 = arith.constant 0 : i32
    %c0_i32_1 = arith.constant 0 : i32
    return %c0_i32, %c0_i32_0 : i32, i32
  }
  func.func @transform_4(%arg0: i32, %arg1: memref<1xi32, #tpu.memory_space<smem>>) -> (i32, i32) {
    %c0_i32 = arith.constant 0 : i32
    %c0_i32_0 = arith.constant 0 : i32
    %c0_i32_1 = arith.constant 0 : i32
    return %c0_i32, %c0_i32_0 : i32, i32
  }
  func.func @transform_5(%arg0: i32, %arg1: memref<1xi32, #tpu.memory_space<smem>>) -> (i32, i32) {
    %c0_i32 = arith.constant 0 : i32
    %c0_i32_0 = arith.constant 0 : i32
    %c0_i32_1 = arith.constant 0 : i32
    return %c0_i32, %c0_i32_0 : i32, i32
  }
  func.func @transform_6(%arg0: i32, %arg1: memref<1xi32, #tpu.memory_space<smem>>) -> (i32, i32) {
    %c0_i32 = arith.constant 0 : i32
    %c0_i32_0 = arith.constant 0 : i32
    %c0_i32_1 = arith.constant 0 : i32
    return %c0_i32, %c0_i32_0 : i32, i32
  }
  func.func @transform_7(%arg0: i32, %arg1: memref<1xi32, #tpu.memory_space<smem>>) -> (i32, i32) {
    %c0_i32 = arith.constant 0 : i32
    %c0_i32_0 = arith.constant 0 : i32
    %c0_i32_1 = arith.constant 0 : i32
    return %c0_i32, %c0_i32_0 : i32, i32
  }
  func.func @transform_8(%arg0: i32, %arg1: memref<1xi32, #tpu.memory_space<smem>>) -> (i32, i32) {
    %c0_i32 = arith.constant 0 : i32
    %c0_i32_0 = arith.constant 0 : i32
    %c0_i32_1 = arith.constant 0 : i32
    return %c0_i32, %c0_i32_0 : i32, i32
  }
  func.func @transform_9(%arg0: i32, %arg1: memref<1xi32, #tpu.memory_space<smem>>) -> (i32, i32) {
    %c0_i32 = arith.constant 0 : i32
    %c0_i32_0 = arith.constant 0 : i32
    %c0_i32_1 = arith.constant 0 : i32
    return %c0_i32, %c0_i32_0 : i32, i32
  }
}

</mosaic_0001>

<llo_original>
// kernel: tpu_custom_call.1
$region0: #{tpu_custom_call.1}
  #allocation0 [shape = 'u32[]', space=smem, size = 0x4, offset = 0x4, fixed_abs, tag = 'smem constant byte address 0x4 - core index']
  #allocation1 [shape = 'u32[144,128]{1,0:T(1,128)}', space=vmem, size = 0x12000, scoped, tag = 'internal scratch']
  #allocation2 [shape = 's32[1]{0}', space=sflag, size = 0x4, scoped, tag = 'scoped memory for tpu_custom_call.1']
  #allocation3 [shape = 's32[1]{0:T(128)S(6)}', space=smem, size = 0x200, scoped, tag = 'prefetched SMEM operand 0']
  %s0 = inlined_call_operand.<no memory space> [shape: s32[1], index: 0, kind: input, shape index: {}]
  %s1 = inlined_call_operand.hbm [shape: f32[8,8,128], index: 1, kind: input, shape index: {}]
  %s2 = inlined_call_operand.hbm [shape: f32[8,128], index: 2, kind: input, shape index: {}]
  %s3 = inlined_call_operand.hbm [shape: bf16[128,128], index: 3, kind: input, shape index: {}]
  %s4 = inlined_call_operand.hbm [shape: bf16[128,128], index: 4, kind: input, shape index: {}]
  %s5 = inlined_call_operand.hbm [shape: bf16[128,128], index: 5, kind: input, shape index: {}]
  %s6 = inlined_call_operand.hbm [shape: bf16[128,128], index: 6, kind: input, shape index: {}]
  %s7 = inlined_call_operand.vmem [shape: f32[8,128], index: 7, kind: input, shape index: {}]
  %s8 = inlined_call_operand.vmem [shape: f32[8,128], index: 8, kind: input, shape index: {}]
  %s9 = inlined_call_operand.vmem [shape: f32[8,128], index: 9, kind: input, shape index: {}]
  %s10 = inlined_call_operand.hbm [shape: f32[8,128], index: 10, kind: output, shape index: {}]
  %s11 = sld [smem:[#allocation0]]
  $region70: #{tpu_custom_call.1} parent=0
    _
  %s13 = ssub.s32 1, %s11
  %s14 = scalar_select 0, %s13, %s11
  %15 = sst [smem:[#allocation3]] %s0
  $region1: #{tpu_custom_call.1} parent=0
    #allocation4 [shape = 'u8[4096]{0}', space=vmem, size = 0x1000, scoped, tag = 'input window, operand 1, single buffered']
    #allocation5 [shape = 's32[1]{0}', space=sflag, size = 0x4, scoped, tag = 'scoped memory for tpu_custom_call.1']
    #allocation6 [shape = 's32[1]{0}', space=sflag, size = 0x4, scoped, tag = 'scoped memory for tpu_custom_call.1']
    #allocation7 [shape = 'u8[4096]{0}', space=vmem, size = 0x1000, scoped, tag = 'input window, operand 2, single buffered']
    #allocation8 [shape = 's32[1]{0}', space=sflag, size = 0x4, scoped, tag = 'scoped memory for tpu_custom_call.1']
    #allocation9 [shape = 'u8[32768]{0}', space=vmem, size = 0x8000, scoped, tag = 'input window, operand 3, single buffered']
    #allocation10 [shape = 'u8[32768]{0}', space=vmem, size = 0x8000, scoped, tag = 'input window, operand 4, single buffered']
    #allocation11 [shape = 's32[1]{0}', space=sflag, size = 0x4, scoped, tag = 'scoped memory for tpu_custom_call.1']
    #allocation12 [shape = 'u8[32768]{0}', space=vmem, size = 0x8000, scoped, tag = 'input window, operand 5, single buffered']
    #allocation13 [shape = 'u8[32768]{0}', space=vmem, size = 0x8000, scoped, tag = 'input window, operand 6, single buffered']
    #allocation14 [shape = 's32[1]{0}', space=sflag, size = 0x4, scoped, tag = 'scoped memory for tpu_custom_call.1']
    #allocation15 [shape = 'u8[4096]{0}', space=vmem, size = 0x1000, scoped, tag = 'output window, operand 0, single buffered']
    %16 = vsyncpa [#allocation5], 0
    %17 = vsyncpa [#allocation8], 0
    %18 = vsyncpa [#allocation11], 0
    %19 = vsyncpa [#allocation14], 0
    %20 = vsyncpa [#allocation6], 0
    // Predicated region
    $region2: #{tpu_custom_call.1} parent=1 // pred_check
      _
    $region3: #{tpu_custom_call.1} parent=1 // pred_check_branch
      %22 = sbr.rel (0) target = $region5
    $region4: #{tpu_custom_call.1} parent=1 // pred_region
      %s23 = sld [smem:[#allocation3]]
      %s25 = ssub.s32 128, 128
      %26 = vsyncadd [#allocation5], %s25
      %s27 = smul.addr %s23, 128
      %s28 = scalar_lea.hbm %s1, %s27
      %s30 = sshll.u32 [#allocation4], 4
      %s31 = int_to_ptr.vmem [resolvable:$true] %s30
      %33 = dma.hbm_to_vmem [thread:$0]  %s28, 128, %s31, [#allocation5]
    $region5: #{tpu_custom_call.1} parent=1 // pred_fallthru
      _
    // Predicated region
    $region6: #{tpu_custom_call.1} parent=1 // pred_check
      _
    $region7: #{tpu_custom_call.1} parent=1 // pred_check_branch
      %35 = sbr.rel (0) target = $region9
    $region8: #{tpu_custom_call.1} parent=1 // pred_region
      %s37 = ssub.s32 128, 128
      %38 = vsyncadd [#allocation8], %s37
      %s40 = sshll.u32 [#allocation7], 4
      %s41 = int_to_ptr.vmem [resolvable:$true] %s40
      %43 = dma.hbm_to_vmem [thread:$0]  %s2, 128, %s41, [#allocation8]
    $region9: #{tpu_custom_call.1} parent=1 // pred_fallthru
      _
    // Predicated region
    $region10: #{tpu_custom_call.1} parent=1 // pred_check
      _
    $region11: #{tpu_custom_call.1} parent=1 // pred_check_branch
      %45 = sbr.rel (0) target = $region13
    $region12: #{tpu_custom_call.1} parent=1 // pred_region
      %s47 = ssub.s32 1024, 1024
      %48 = vsyncadd [#allocation8], %s47
      %s49 = sshll.u32 [#allocation9], 4
      %s50 = int_to_ptr.vmem [resolvable:$true] %s49
      %55 = dma.hbm_to_vmem [thread:$0]  %s3, 1024, %s50, [#allocation8], 64, 64, 4
    $region13: #{tpu_custom_call.1} parent=1 // pred_fallthru
      _
    // Predicated region
    $region14: #{tpu_custom_call.1} parent=1 // pred_check
      _
    $region15: #{tpu_custom_call.1} parent=1 // pred_check_branch
      %57 = sbr.rel (0) target = $region17
    $region16: #{tpu_custom_call.1} parent=1 // pred_region
      %s59 = ssub.s32 1024, 1024
      %60 = vsyncadd [#allocation11], %s59
      %s61 = sshll.u32 [#allocation10], 4
      %s62 = int_to_ptr.vmem [resolvable:$true] %s61
      %67 = dma.hbm_to_vmem [thread:$0]  %s4, 1024, %s62, [#allocation11], 64, 64, 4
    $region17: #{tpu_custom_call.1} parent=1 // pred_fallthru
      _
    // Predicated region
    $region18: #{tpu_custom_call.1} parent=1 // pred_check
      _
    $region19: #{tpu_custom_call.1} parent=1 // pred_check_branch
      %69 = sbr.rel (0) target = $region21
    $region20: #{tpu_custom_call.1} parent=1 // pred_region
      %s71 = ssub.s32 1024, 1024
      %72 = vsyncadd [#allocation11], %s71
      %s73 = sshll.u32 [#allocation12], 4
      %s74 = int_to_ptr.vmem [resolvable:$true] %s73
      %79 = dma.hbm_to_vmem [thread:$0]  %s5, 1024, %s74, [#allocation11], 64, 64, 4
    $region21: #{tpu_custom_call.1} parent=1 // pred_fallthru
      _
    // Predicated region
    $region22: #{tpu_custom_call.1} parent=1 // pred_check
      _
    $region23: #{tpu_custom_call.1} parent=1 // pred_check_branch
      %81 = sbr.rel (0) target = $region25
    $region24: #{tpu_custom_call.1} parent=1 // pred_region
      %s83 = ssub.s32 1024, 1024
      %84 = vsyncadd [#allocation14], %s83
      %s85 = sshll.u32 [#allocation13], 4
      %s86 = int_to_ptr.vmem [resolvable:$true] %s85
      %91 = dma.hbm_to_vmem [thread:$0]  %s6, 1024, %s86, [#allocation14], 64, 64, 4
    $region25: #{tpu_custom_call.1} parent=1 // pred_fallthru
      _
    // Predicated region
    $region26: #{tpu_custom_call.1} parent=1 // pred_check
      _
    $region27: #{tpu_custom_call.1} parent=1 // pred_check_branch
      %93 = sbr.rel (0) target = $region29
    $region28: #{tpu_custom_call.1} parent=1 // pred_region
      _
    $region29: #{tpu_custom_call.1} parent=1 // pred_fallthru
      _
    // Predicated region
    $region30: #{tpu_custom_call.1} parent=1 // pred_check
      _
    $region31: #{tpu_custom_call.1} parent=1 // pred_check_branch
      %95 = sbr.rel (0) target = $region33
    $region32: #{tpu_custom_call.1} parent=1 // pred_region
      _
    $region33: #{tpu_custom_call.1} parent=1 // pred_fallthru
      _
    // Predicated region
    $region34: #{tpu_custom_call.1} parent=1 // pred_check
      _
    $region35: #{tpu_custom_call.1} parent=1 // pred_check_branch
      %97 = sbr.rel (0) target = $region37
    $region36: #{tpu_custom_call.1} parent=1 // pred_region
      _
    $region37: #{tpu_custom_call.1} parent=1 // pred_fallthru
      _
    // Predicated region
    $region38: #{tpu_custom_call.1} parent=1 // pred_check
      _
    $region39: #{tpu_custom_call.1} parent=1 // pred_check_branch
      %99 = sbr.rel (0) target = $region41
    $region40: #{tpu_custom_call.1} parent=1 // pred_region
      %100 = dma.done [#allocation5], 128
    $region41: #{tpu_custom_call.1} parent=1 // pred_fallthru
      _
    // Predicated region
    $region42: #{tpu_custom_call.1} parent=1 // pred_check
      _
    $region43: #{tpu_custom_call.1} parent=1 // pred_check_branch
      %102 = sbr.rel (0) target = $region45
    $region44: #{tpu_custom_call.1} parent=1 // pred_region
      %103 = dma.done [#allocation8], 128
    $region45: #{tpu_custom_call.1} parent=1 // pred_fallthru
      _
    // Predicated region
    $region46: #{tpu_custom_call.1} parent=1 // pred_check
      _
    $region47: #{tpu_custom_call.1} parent=1 // pred_check_branch
      %105 = sbr.rel (0) target = $region49
    $region48: #{tpu_custom_call.1} parent=1 // pred_region
      %106 = dma.done [#allocation8], 1024
    $region49: #{tpu_custom_call.1} parent=1 // pred_fallthru
      _
    // Predicated region
    $region50: #{tpu_custom_call.1} parent=1 // pred_check
      _
    $region51: #{tpu_custom_call.1} parent=1 // pred_check_branch
      %108 = sbr.rel (0) target = $region53
    $region52: #{tpu_custom_call.1} parent=1 // pred_region
      %109 = dma.done [#allocation11], 1024
    $region53: #{tpu_custom_call.1} parent=1 // pred_fallthru
      _
    // Predicated region
    $region54: #{tpu_custom_call.1} parent=1 // pred_check
      _
    $region55: #{tpu_custom_call.1} parent=1 // pred_check_branch
      %111 = sbr.rel (0) target = $region57
    $region56: #{tpu_custom_call.1} parent=1 // pred_region
      %112 = dma.done [#allocation11], 1024
    $region57: #{tpu_custom_call.1} parent=1 // pred_fallthru
      _
    // Predicated region
    $region58: #{tpu_custom_call.1} parent=1 // pred_check
      _
    $region59: #{tpu_custom_call.1} parent=1 // pred_check_branch
      %114 = sbr.rel (0) target = $region61
    $region60: #{tpu_custom_call.1} parent=1 // pred_region
      %115 = dma.done [#allocation14], 1024
    $region61: #{tpu_custom_call.1} parent=1 // pred_fallthru
      _
    %s116 = sld [smem:[#allocation3]]
    %v118 = vld [vmem:[#allocation4] sm:$0xff]
    %v119 = vld [vmem:[#allocation7] sm:$0xff]
    %v120 = vld [vmem:[#allocation9] sm:$0xf]
    %v121 = vld [vmem:[#allocation9 + $0x4] sm:$0xf]
    %v122 = vld [vmem:[#allocation9 + $0x8] sm:$0xf]
    %v123 = vld [vmem:[#allocation9 + $0xc] sm:$0xf]
    %v124 = vld [vmem:[#allocation9 + $0x10] sm:$0xf]
    %v125 = vld [vmem:[#allocation9 + $0x14] sm:$0xf]
    %v126 = vld [vmem:[#allocation9 + $0x18] sm:$0xf]
    %v127 = vld [vmem:[#allocation9 + $0x1c] sm:$0xf]
    %v128 = vld [vmem:[#allocation9 + $0x20] sm:$0xf]
    %v129 = vld [vmem:[#allocation9 + $0x24] sm:$0xf]
    %v130 = vld [vmem:[#allocation9 + $0x28] sm:$0xf]
    %v131 = vld [vmem:[#allocation9 + $0x2c] sm:$0xf]
    %v132 = vld [vmem:[#allocation9 + $0x30] sm:$0xf]
    %v133 = vld [vmem:[#allocation9 + $0x34] sm:$0xf]
    %v134 = vld [vmem:[#allocation9 + $0x38] sm:$0xf]
    %v135 = vld [vmem:[#allocation9 + $0x3c] sm:$0xf]
    %v136 = vld [vmem:[#allocation10] sm:$0xf]
    %v137 = vld [vmem:[#allocation10 + $0x4] sm:$0xf]
    %v138 = vld [vmem:[#allocation10 + $0x8] sm:$0xf]
    %v139 = vld [vmem:[#allocation10 + $0xc] sm:$0xf]
    %v140 = vld [vmem:[#allocation10 + $0x10] sm:$0xf]
    %v141 = vld [vmem:[#allocation10 + $0x14] sm:$0xf]
    %v142 = vld [vmem:[#allocation10 + $0x18] sm:$0xf]
    %v143 = vld [vmem:[#allocation10 + $0x1c] sm:$0xf]
    %v144 = vld [vmem:[#allocation10 + $0x20] sm:$0xf]
    %v145 = vld [vmem:[#allocation10 + $0x24] sm:$0xf]
    %v146 = vld [vmem:[#allocation10 + $0x28] sm:$0xf]
    %v147 = vld [vmem:[#allocation10 + $0x2c] sm:$0xf]
    %v148 = vld [vmem:[#allocation10 + $0x30] sm:$0xf]
    %v149 = vld [vmem:[#allocation10 + $0x34] sm:$0xf]
    %v150 = vld [vmem:[#allocation10 + $0x38] sm:$0xf]
    %v151 = vld [vmem:[#allocation10 + $0x3c] sm:$0xf]
    %v152 = vld [vmem:[#allocation12] sm:$0xf]
    %v153 = vld [vmem:[#allocation12 + $0x4] sm:$0xf]
    %v154 = vld [vmem:[#allocation12 + $0x8] sm:$0xf]
    %v155 = vld [vmem:[#allocation12 + $0xc] sm:$0xf]
    %v156 = vld [vmem:[#allocation12 + $0x10] sm:$0xf]
    %v157 = vld [vmem:[#allocation12 + $0x14] sm:$0xf]
    %v158 = vld [vmem:[#allocation12 + $0x18] sm:$0xf]
    %v159 = vld [vmem:[#allocation12 + $0x1c] sm:$0xf]
    %v160 = vld [vmem:[#allocation12 + $0x20] sm:$0xf]
    %v161 = vld [vmem:[#allocation12 + $0x24] sm:$0xf]
    %v162 = vld [vmem:[#allocation12 + $0x28] sm:$0xf]
    %v163 = vld [vmem:[#allocation12 + $0x2c] sm:$0xf]
    %v164 = vld [vmem:[#allocation12 + $0x30] sm:$0xf]
    %v165 = vld [vmem:[#allocation12 + $0x34] sm:$0xf]
    %v166 = vld [vmem:[#allocation12 + $0x38] sm:$0xf]
    %v167 = vld [vmem:[#allocation12 + $0x3c] sm:$0xf]
    %v168 = vld [vmem:[#allocation13] sm:$0xf]
    %v169 = vld [vmem:[#allocation13 + $0x4] sm:$0xf]
    %v170 = vld [vmem:[#allocation13 + $0x8] sm:$0xf]
    %v171 = vld [vmem:[#allocation13 + $0xc] sm:$0xf]
    %v172 = vld [vmem:[#allocation13 + $0x10] sm:$0xf]
    %v173 = vld [vmem:[#allocation13 + $0x14] sm:$0xf]
    %v174 = vld [vmem:[#allocation13 + $0x18] sm:$0xf]
    %v175 = vld [vmem:[#allocation13 + $0x1c] sm:$0xf]
    %v176 = vld [vmem:[#allocation13 + $0x20] sm:$0xf]
    %v177 = vld [vmem:[#allocation13 + $0x24] sm:$0xf]
    %v178 = vld [vmem:[#allocation13 + $0x28] sm:$0xf]
    %v179 = vld [vmem:[#allocation13 + $0x2c] sm:$0xf]
    %v180 = vld [vmem:[#allocation13 + $0x30] sm:$0xf]
    %v181 = vld [vmem:[#allocation13 + $0x34] sm:$0xf]
    %v182 = vld [vmem:[#allocation13 + $0x38] sm:$0xf]
    %v183 = vld [vmem:[#allocation13 + $0x3c] sm:$0xf]
    %v184 = vld [vmem:[%s7] sm:$0xff]
    %v185 = vld [vmem:[%s8] sm:$0xff]
    %v186 = vld [vmem:[%s9] sm:$0xff]
    %v187 = vpack.c.bf16 %v118, %v118
    %v188 = vpack.c.bf16 %v119, %v119
    %v205 = vunpack.c.l.b16 %v136
    %v206 = vunpack.c.l.b16 %v137
    %v207 = vunpack.c.l.b16 %v138
    %v208 = vunpack.c.l.b16 %v139
    %v209 = vunpack.c.l.b16 %v140
    %v210 = vunpack.c.l.b16 %v141
    %v211 = vunpack.c.l.b16 %v142
    %v212 = vunpack.c.l.b16 %v143
    %v213 = vunpack.c.l.b16 %v144
    %v214 = vunpack.c.l.b16 %v145
    %v215 = vunpack.c.l.b16 %v146
    %v216 = vunpack.c.l.b16 %v147
    %v217 = vunpack.c.l.b16 %v148
    %v218 = vunpack.c.l.b16 %v149
    %v219 = vunpack.c.l.b16 %v150
    %v220 = vunpack.c.l.b16 %v151
    %v221 = vpack.c.b16 %v206, %v205
    %v222 = vpack.c.b16 %v208, %v207
    %v223 = vpack.c.b16 %v210, %v209
    %v224 = vpack.c.b16 %v212, %v211
    %v225 = vpack.c.b16 %v214, %v213
    %v226 = vpack.c.b16 %v216, %v215
    %v227 = vpack.c.b16 %v218, %v217
    %v228 = vpack.c.b16 %v220, %v219
    %237 = vmatprep.subr.bf16.mxu0 0
    %238 = vmatpush1.bf16.msra.mxu0 %v221
    %239 = vmatprep.subr.bf16.mxu0 0
    %240 = vmatpush1.bf16.msra.mxu0 %v222
    %241 = vmatprep.subr.bf16.mxu0 0
    %242 = vmatpush1.bf16.msra.mxu0 %v223
    %243 = vmatprep.subr.bf16.mxu0 0
    %244 = vmatpush1.bf16.msra.mxu0 %v224
    %245 = vmatprep.subr.bf16.mxu0 0
    %246 = vmatpush1.bf16.msra.mxu0 %v225
    %247 = vmatprep.subr.bf16.mxu0 0
    %248 = vmatpush1.bf16.msra.mxu0 %v226
    %249 = vmatprep.subr.bf16.mxu0 0
    %250 = vmatpush1.bf16.msra.mxu0 %v227
    %251 = vmatprep.subr.bf16.mxu0 0
    %252 = vmatpush1.bf16.msra.mxu0 %v228
    %253 = vmatprep.subr.bf16.mxu0 0
    %254 = vmatpush1.bf16.msra.mxu0 0
    %255 = vmatprep.subr.bf16.mxu0 0
    %256 = vmatpush1.bf16.msra.mxu0 0
    %257 = vmatprep.subr.bf16.mxu0 0
    %258 = vmatpush1.bf16.msra.mxu0 0
    %259 = vmatprep.subr.bf16.mxu0 0
    %260 = vmatpush1.bf16.msra.mxu0 0
    %261 = vmatprep.subr.bf16.mxu0 0
    %262 = vmatpush1.bf16.msra.mxu0 0
    %263 = vmatprep.subr.bf16.mxu0 0
    %264 = vmatpush1.bf16.msra.mxu0 0
    %265 = vmatprep.subr.bf16.mxu0 0
    %266 = vmatpush1.bf16.msra.mxu0 0
    %267 = vmatprep.subr.bf16.mxu0 0
    %268 = vmatpush1.bf16.msra.mxu0 0
    %269 = vmatprep.mubr.bf16.mxu0 0
    %270 = vmatmul.mubr.bf16.gmra.mrb[0].mxu0 %v188
    %v271 = vpop.f32.mrb[0].mxu0
    %v272 = vadd.f32 0.0, %v271
    %v273 = vpop.f32.mrb[0].mxu0
    %v274 = vpop.f32.mrb[0].mxu0
    %v275 = vpop.f32.mrb[0].mxu0
    %276 = vdwg.mxu0
    %v293 = vunpack.c.l.b16 %v120
    %v294 = vunpack.c.l.b16 %v121
    %v295 = vunpack.c.l.b16 %v122
    %v296 = vunpack.c.l.b16 %v123
    %v297 = vunpack.c.l.b16 %v124
    %v298 = vunpack.c.l.b16 %v125
    %v299 = vunpack.c.l.b16 %v126
    %v300 = vunpack.c.l.b16 %v127
    %v301 = vunpack.c.l.b16 %v128
    %v302 = vunpack.c.l.b16 %v129
    %v303 = vunpack.c.l.b16 %v130
    %v304 = vunpack.c.l.b16 %v131
    %v305 = vunpack.c.l.b16 %v132
    %v306 = vunpack.c.l.b16 %v133
    %v307 = vunpack.c.l.b16 %v134
    %v308 = vunpack.c.l.b16 %v135
    %v309 = vpack.c.b16 %v294, %v293
    %v310 = vpack.c.b16 %v296, %v295
    %v311 = vpack.c.b16 %v298, %v297
    %v312 = vpack.c.b16 %v300, %v299
    %v313 = vpack.c.b16 %v302, %v301
    %v314 = vpack.c.b16 %v304, %v303
    %v315 = vpack.c.b16 %v306, %v305
    %v316 = vpack.c.b16 %v308, %v307
    %325 = vmatprep.subr.bf16.mxu0 0
    %326 = vmatpush1.bf16.msra.mxu0 %v309
    %327 = vmatprep.subr.bf16.mxu0 0
    %328 = vmatpush1.bf16.msra.mxu0 %v310
    %329 = vmatprep.subr.bf16.mxu0 0
    %330 = vmatpush1.bf16.msra.mxu0 %v311
    %331 = vmatprep.subr.bf16.mxu0 0
    %332 = vmatpush1.bf16.msra.mxu0 %v312
    %333 = vmatprep.subr.bf16.mxu0 0
    %334 = vmatpush1.bf16.msra.mxu0 %v313
    %335 = vmatprep.subr.bf16.mxu0 0
    %336 = vmatpush1.bf16.msra.mxu0 %v314
    %337 = vmatprep.subr.bf16.mxu0 0
    %338 = vmatpush1.bf16.msra.mxu0 %v315
    %339 = vmatprep.subr.bf16.mxu0 0
    %340 = vmatpush1.bf16.msra.mxu0 %v316
    %341 = vmatprep.subr.bf16.mxu0 0
    %342 = vmatpush1.bf16.msra.mxu0 0
    %343 = vmatprep.subr.bf16.mxu0 0
    %344 = vmatpush1.bf16.msra.mxu0 0
    %345 = vmatprep.subr.bf16.mxu0 0
    %346 = vmatpush1.bf16.msra.mxu0 0
    %347 = vmatprep.subr.bf16.mxu0 0
    %348 = vmatpush1.bf16.msra.mxu0 0
    %349 = vmatprep.subr.bf16.mxu0 0
    %350 = vmatpush1.bf16.msra.mxu0 0
    %351 = vmatprep.subr.bf16.mxu0 0
    %352 = vmatpush1.bf16.msra.mxu0 0
    %353 = vmatprep.subr.bf16.mxu0 0
    %354 = vmatpush1.bf16.msra.mxu0 0
    %355 = vmatprep.subr.bf16.mxu0 0
    %356 = vmatpush1.bf16.msra.mxu0 0
    %357 = vmatprep.mubr.bf16.mxu0 0
    %358 = vmatmul.mubr.bf16.gmra.mrb[0].mxu0 %v187
    %v359 = vpop.f32.mrb[0].mxu0
    %v360 = vadd.f32 %v272, %v359
    %v361 = vpop.f32.mrb[0].mxu0
    %v362 = vpop.f32.mrb[0].mxu0
    %v363 = vpop.f32.mrb[0].mxu0
    %364 = vdwg.mxu0
    %v365 = vadd.f32 %v360, %v184
    %v366 = vtanh.pop %v365
    %v367 = vpack.c.bf16 %v366, %v366
    %v384 = vunpack.c.l.b16 %v152
    %v385 = vunpack.c.l.b16 %v153
    %v386 = vunpack.c.l.b16 %v154
    %v387 = vunpack.c.l.b16 %v155
    %v388 = vunpack.c.l.b16 %v156
    %v389 = vunpack.c.l.b16 %v157
    %v390 = vunpack.c.l.b16 %v158
    %v391 = vunpack.c.l.b16 %v159
    %v392 = vunpack.c.l.b16 %v160
    %v393 = vunpack.c.l.b16 %v161
    %v394 = vunpack.c.l.b16 %v162
    %v395 = vunpack.c.l.b16 %v163
    %v396 = vunpack.c.l.b16 %v164
    %v397 = vunpack.c.l.b16 %v165
    %v398 = vunpack.c.l.b16 %v166
    %v399 = vunpack.c.l.b16 %v167
    %v400 = vpack.c.b16 %v385, %v384
    %v401 = vpack.c.b16 %v387, %v386
    %v402 = vpack.c.b16 %v389, %v388
    %v403 = vpack.c.b16 %v391, %v390
    %v404 = vpack.c.b16 %v393, %v392
    %v405 = vpack.c.b16 %v395, %v394
    %v406 = vpack.c.b16 %v397, %v396
    %v407 = vpack.c.b16 %v399, %v398
    %416 = vmatprep.subr.bf16.mxu0 0
    %417 = vmatpush1.bf16.msra.mxu0 %v400
    %418 = vmatprep.subr.bf16.mxu0 0
    %419 = vmatpush1.bf16.msra.mxu0 %v401
    %420 = vmatprep.subr.bf16.mxu0 0
    %421 = vmatpush1.bf16.msra.mxu0 %v402
    %422 = vmatprep.subr.bf16.mxu0 0
    %423 = vmatpush1.bf16.msra.mxu0 %v403
    %424 = vmatprep.subr.bf16.mxu0 0
    %425 = vmatpush1.bf16.msra.mxu0 %v404
    %426 = vmatprep.subr.bf16.mxu0 0
    %427 = vmatpush1.bf16.msra.mxu0 %v405
    %428 = vmatprep.subr.bf16.mxu0 0
    %429 = vmatpush1.bf16.msra.mxu0 %v406
    %430 = vmatprep.subr.bf16.mxu0 0
    %431 = vmatpush1.bf16.msra.mxu0 %v407
    %432 = vmatprep.subr.bf16.mxu0 0
    %433 = vmatpush1.bf16.msra.mxu0 0
    %434 = vmatprep.subr.bf16.mxu0 0
    %435 = vmatpush1.bf16.msra.mxu0 0
    %436 = vmatprep.subr.bf16.mxu0 0
    %437 = vmatpush1.bf16.msra.mxu0 0
    %438 = vmatprep.subr.bf16.mxu0 0
    %439 = vmatpush1.bf16.msra.mxu0 0
    %440 = vmatprep.subr.bf16.mxu0 0
    %441 = vmatpush1.bf16.msra.mxu0 0
    %442 = vmatprep.subr.bf16.mxu0 0
    %443 = vmatpush1.bf16.msra.mxu0 0
    %444 = vmatprep.subr.bf16.mxu0 0
    %445 = vmatpush1.bf16.msra.mxu0 0
    %446 = vmatprep.subr.bf16.mxu0 0
    %447 = vmatpush1.bf16.msra.mxu0 0
    %448 = vmatprep.mubr.bf16.mxu0 0
    %449 = vmatmul.mubr.bf16.gmra.mrb[0].mxu0 %v367
    %v450 = vpop.f32.mrb[0].mxu0
    %v451 = vadd.f32 %v185, %v450
    %v452 = vpop.f32.mrb[0].mxu0
    %v453 = vpop.f32.mrb[0].mxu0
    %v454 = vpop.f32.mrb[0].mxu0
    %455 = vdwg.mxu0
    %vm456 = vcmp.gt.f32.partialorder %v451, 0.0
    %v457 = vmin.f32 %v451, 0.0
    %v458 = vmul.f32 %v457, 1.442695
    %v459 = vpow.pop %v458
    %v460 = vsub.f32 %v459, 1.0
    %v461 = vsel %vm456, %v451, %v460
    %v462 = vadd.f32 %v461, 1.0
    %v463 = vand.u32 2147483647, %v462
    %v464 = vmul.f32 %v365, %v463
    %v465 = vpack.c.bf16 %v464, %v464
    %v466 = vxor.u32 %v451, 2147483648
    %v467 = vmul.f32 %v466, 1.442695
    %v468 = vpow.pop %v467
    %v469 = vadd.f32 %v468, 1.0
    %v470 = vrcp.pop %v469
    %v471 = vmul.f32 1.0, %v470
    %v488 = vunpack.c.l.b16 %v168
    %v489 = vunpack.c.l.b16 %v169
    %v490 = vunpack.c.l.b16 %v170
    %v491 = vunpack.c.l.b16 %v171
    %v492 = vunpack.c.l.b16 %v172
    %v493 = vunpack.c.l.b16 %v173
    %v494 = vunpack.c.l.b16 %v174
    %v495 = vunpack.c.l.b16 %v175
    %v496 = vunpack.c.l.b16 %v176
    %v497 = vunpack.c.l.b16 %v177
    %v498 = vunpack.c.l.b16 %v178
    %v499 = vunpack.c.l.b16 %v179
    %v500 = vunpack.c.l.b16 %v180
    %v501 = vunpack.c.l.b16 %v181
    %v502 = vunpack.c.l.b16 %v182
    %v503 = vunpack.c.l.b16 %v183
    %v504 = vpack.c.b16 %v489, %v488
    %v505 = vpack.c.b16 %v491, %v490
    %v506 = vpack.c.b16 %v493, %v492
    %v507 = vpack.c.b16 %v495, %v494
    %v508 = vpack.c.b16 %v497, %v496
    %v509 = vpack.c.b16 %v499, %v498
    %v510 = vpack.c.b16 %v501, %v500
    %v511 = vpack.c.b16 %v503, %v502
    %520 = vmatprep.subr.bf16.mxu0 0
    %521 = vmatpush1.bf16.msra.mxu0 %v504
    %522 = vmatprep.subr.bf16.mxu0 0
    %523 = vmatpush1.bf16.msra.mxu0 %v505
    %524 = vmatprep.subr.bf16.mxu0 0
    %525 = vmatpush1.bf16.msra.mxu0 %v506
    %526 = vmatprep.subr.bf16.mxu0 0
    %527 = vmatpush1.bf16.msra.mxu0 %v507
    %528 = vmatprep.subr.bf16.mxu0 0
    %529 = vmatpush1.bf16.msra.mxu0 %v508
    %530 = vmatprep.subr.bf16.mxu0 0
    %531 = vmatpush1.bf16.msra.mxu0 %v509
    %532 = vmatprep.subr.bf16.mxu0 0
    %533 = vmatpush1.bf16.msra.mxu0 %v510
    %534 = vmatprep.subr.bf16.mxu0 0
    %535 = vmatpush1.bf16.msra.mxu0 %v511
    %536 = vmatprep.subr.bf16.mxu0 0
    %537 = vmatpush1.bf16.msra.mxu0 0
    %538 = vmatprep.subr.bf16.mxu0 0
    %539 = vmatpush1.bf16.msra.mxu0 0
    %540 = vmatprep.subr.bf16.mxu0 0
    %541 = vmatpush1.bf16.msra.mxu0 0
    %542 = vmatprep.subr.bf16.mxu0 0
    %543 = vmatpush1.bf16.msra.mxu0 0
    %544 = vmatprep.subr.bf16.mxu0 0
    %545 = vmatpush1.bf16.msra.mxu0 0
    %546 = vmatprep.subr.bf16.mxu0 0
    %547 = vmatpush1.bf16.msra.mxu0 0
    %548 = vmatprep.subr.bf16.mxu0 0
    %549 = vmatpush1.bf16.msra.mxu0 0
    %550 = vmatprep.subr.bf16.mxu0 0
    %551 = vmatpush1.bf16.msra.mxu0 0
    %552 = vmatprep.mubr.bf16.mxu0 0
    %553 = vmatmul.mubr.bf16.gmra.mrb[0].mxu0 %v465
    %v554 = vpop.f32.mrb[0].mxu0
    %v555 = vadd.f32 %v471, %v554
    %v556 = vpop.f32.mrb[0].mxu0
    %v557 = vpop.f32.mrb[0].mxu0
    %v558 = vpop.f32.mrb[0].mxu0
    %559 = vdwg.mxu0
    %v560 = vmul.f32 %v186, %v555
    %v561 = vmax.f32 %v560, -1.0
    %v562 = vmin.f32 %v561, 1.0
    %563 = vst [vmem:[#allocation15] sm:$0xff] %v562
    // Predicated region
    $region62: #{tpu_custom_call.1} parent=1 // pred_check
      _
    $region63: #{tpu_custom_call.1} parent=1 // pred_check_branch
      %565 = sbr.rel (0) target = $region65
    $region64: #{tpu_custom_call.1} parent=1 // pred_region
      %s567 = ssub.s32 128, 128
      %568 = vsyncadd [#allocation6], %s567
      %s570 = sshll.u32 [#allocation15], 4
      %s571 = int_to_ptr.vmem [resolvable:$true] %s570
      %573 = dma.vmem_to_hbm [thread:$0]  %s571, 128, %s10, [#allocation6]
    $region65: #{tpu_custom_call.1} parent=1 // pred_fallthru
      _
    // Predicated region
    $region66: #{tpu_custom_call.1} parent=1 // pred_check
      _
    $region67: #{tpu_custom_call.1} parent=1 // pred_check_branch
      %575 = sbr.rel (0) target = $region69
    $region68: #{tpu_custom_call.1} parent=1 // pred_region
      %576 = dma.done [#allocation6], 128
    $region69: #{tpu_custom_call.1} parent=1 // pred_fallthru
      _
    %577 = vsyncpa [#allocation5], 1
    %578 = vsyncpa [#allocation8], 1
    %579 = vsyncpa [#allocation11], 1
    %580 = vsyncpa [#allocation14], 1
    %581 = vsyncpa [#allocation6], 1

</llo_original>
